<compile_context>
chip_gen: v6e
topology: v6e:2x2x1
jax: 0.10.0
libtpu: 0.0.40
codegen_flags: <defaults>
</compile_context>

<pallas_src>
import functools

import jax
import jax.numpy as jnp
import numpy as np
from jax.experimental import pallas as pl
from jax.experimental.pallas import tpu as pltpu


def _round_up(x, m):
    return (x + m - 1) // m * m


def decoder_step_kernel(xh_ref, c0_ref, w_cat_ref, b_lstm_ref, w_fc_ref, b_fc_ref,
                        idx_ref, h_ref, c_ref,
                        h_sc, max_val_sc, max_idx_sc, *, hp, tv):
    """Grid axis 0 tiles the (padded) vocab; the LSTM cell runs once on step 0."""
    v = pl.program_id(0)

    @pl.when(v == 0)
    def _():
        # ---- LSTM cell (single time step), PyTorch gate order i, f, g, o ----
        # One fused matmul: [x, h0] (Bp, E+Hp) @ [w_ih_t; w_hh_t] (E+Hp, 4Hp), f32.
        gates = jnp.dot(xh_ref[...], w_cat_ref[...],
                        preferred_element_type=jnp.float32) + b_lstm_ref[...]
        i_g = jax.nn.sigmoid(gates[:, 0 * hp:1 * hp])
        f_g = jax.nn.sigmoid(gates[:, 1 * hp:2 * hp])
        g_g = jnp.tanh(gates[:, 2 * hp:3 * hp])
        o_g = jax.nn.sigmoid(gates[:, 3 * hp:4 * hp])
        c_new = f_g * c0_ref[...] + i_g * g_g
        h_new = o_g * jnp.tanh(c_new)               # == lstm_out for seq_len 1
        h_ref[...] = h_new                          # resident f32 outputs
        c_ref[...] = c_new
        h_sc[...] = h_new.astype(jnp.bfloat16)      # bf16 copy feeding the fc matmul
        max_val_sc[...] = jnp.full(max_val_sc.shape, -jnp.inf, dtype=jnp.float32)
        max_idx_sc[...] = jnp.zeros(max_idx_sc.shape, dtype=jnp.int32)

    # ---- fc logits for this vocab tile (bf16 weights, f32 accumulation) ----
    logits = jnp.dot(h_sc[...], w_fc_ref[...],
                     preferred_element_type=jnp.float32) + b_fc_ref[...]    # (Bp, TV)

    # ---- running argmax (first occurrence on ties, like torch/jnp argmax) ----
    tile_max = jnp.max(logits, axis=1, keepdims=True)                       # (Bp, 1)
    lane = jax.lax.broadcasted_iota(jnp.int32, logits.shape, 1)
    tile_arg = jnp.min(jnp.where(logits == tile_max, lane, tv),
                       axis=1, keepdims=True) + v * tv                      # (Bp, 1)
    better = tile_max > max_val_sc[...]        # strict ">" keeps the earliest tile on ties
    max_idx_sc[...] = jnp.where(better, tile_arg, max_idx_sc[...])
    max_val_sc[...] = jnp.where(better, tile_max, max_val_sc[...])

    @pl.when(v == pl.num_programs(0) - 1)
    def _():
        idx_ref[...] = max_idx_sc[...]


def init_params(key, embed_size, hidden_size, vocab_size):
    """Raw parameters in PyTorch layout."""
    ks = jax.random.split(key, 7)
    s = 1.0 / np.sqrt(hidden_size)
    return {
        "w_ih": jax.random.uniform(ks[0], (4 * hidden_size, embed_size), jnp.float32, -s, s),
        "w_hh": jax.random.uniform(ks[1], (4 * hidden_size, hidden_size), jnp.float32, -s, s),
        "b_ih": jax.random.uniform(ks[2], (4 * hidden_size,), jnp.float32, -s, s),
        "b_hh": jax.random.uniform(ks[3], (4 * hidden_size,), jnp.float32, -s, s),
        "w_fc": jax.random.uniform(ks[4], (vocab_size, hidden_size), jnp.float32, -s, s),
        "b_fc": jax.random.uniform(ks[5], (vocab_size,), jnp.float32, -s, s),
        "embed": jax.random.normal(ks[6], (vocab_size, embed_size), jnp.float32),
    }


def pack_params(raw, tv=128):
    """Pad / fuse / cast raw PyTorch-layout weights into the kernel layout.

    For real model sizes use tv in [512, 2048] (multiple of 128); re-derive per
    generation so 2 * (Hp*tv*2 + tv*4) bytes of streamed tiles stays well under
    the scoped-VMEM limit (v7x: ~32 MiB usable of 64 MiB physical).
    """
    _, E = raw["w_ih"].shape
    H = raw["w_hh"].shape[1]
    V = raw["w_fc"].shape[0]
    Hp = _round_up(H, 128)           # gate boundaries land on 128-lane tiles
    Vp = _round_up(V, tv)

    def pad_gates(w, in_dim, in_pad):
        # (4H, in) -> (in_pad, 4*Hp) with gate k occupying columns [k*Hp, k*Hp + H)
        w4 = w.reshape(4, H, in_dim)
        w4 = jnp.pad(w4, ((0, 0), (0, Hp - H), (0, in_pad - in_dim)))
        return w4.transpose(2, 0, 1).reshape(in_pad, 4 * Hp)

    w_ih_t = pad_gates(raw["w_ih"], E, E)                      # (E,  4Hp)
    w_hh_t = pad_gates(raw["w_hh"], H, Hp)                     # (Hp, 4Hp)
    w_cat = jnp.concatenate([w_ih_t, w_hh_t], axis=0)          # (E+Hp, 4Hp)
    b_lstm = jnp.pad((raw["b_ih"] + raw["b_hh"]).reshape(4, H),
                     ((0, 0), (0, Hp - H))).reshape(1, 4 * Hp)

    # fc weight streamed in bf16; padded vocab columns get a huge negative bias so the
    # running argmax can never select them.
    w_fc_t = jnp.pad(raw["w_fc"].T, ((0, Hp - H), (0, Vp - V))).astype(jnp.bfloat16)
    b_fc = jnp.pad(raw["b_fc"], (0, Vp - V), constant_values=-1e30).reshape(1, Vp)

    # VMEM budget estimate (constants + double-buffered fc tiles + outputs + scratch).
    Bp, f32, bf16 = 8, 4, 2
    const_in = (Bp * (E + Hp) + Bp * Hp + (E + Hp) * 4 * Hp + 4 * Hp) * f32
    streamed = 2 * (Hp * tv * bf16 + tv * f32)
    outs = (2 * Bp * Hp + Bp) * f32
    scratch = Bp * Hp * bf16 + Bp * 2 * f32
    vmem_limit = int(min(100 * 2 ** 20,
                         max(32 * 2 ** 20, 2 * (const_in + streamed + outs + scratch))))

    return {
        "w_cat": w_cat, "b_lstm": b_lstm, "w_fc_t": w_fc_t, "b_fc": b_fc,
        "embed": raw["embed"],
        "E": E, "H": H, "Hp": Hp, "V": V, "Vp": Vp, "tv": tv,
        "vmem_limit_bytes": vmem_limit,
    }


def decoder_forward(features, hidden, packed):
    """features: (B, 1, E) f32; hidden: (h0, c0) each (1, B, H).
    Returns (out_ids (B,) int32, new_features (1, B, E), (h_new, c_new))."""
    B, S, E = features.shape
    assert S == 1, "forward() squeezes dim 1, i.e. seq_len must be 1"
    assert E == packed["E"]
    H, Hp = packed["H"], packed["Hp"]
    Vp, tv = packed["Vp"], packed["tv"]
    Bp = _round_up(max(B, 8), 8)                  # pad batch to full sublanes

    h0, c0 = hidden
    x = features.reshape(B, E)
    xh = jnp.zeros((Bp, E + Hp), jnp.float32)
    xh = xh.at[:B, :E].set(x).at[:B, E:E + H].set(h0.reshape(B, H))
    c0_p = jnp.zeros((Bp, Hp), jnp.float32).at[:B, :H].set(c0.reshape(B, H))

    const = lambda v: (0, 0)
    kernel = functools.partial(decoder_step_kernel, hp=Hp, tv=tv)

    idx, h_new, c_new = pl.pallas_call(
        kernel,
        out_shape=(
            jax.ShapeDtypeStruct((Bp, 1), jnp.int32),     # argmax ids
            jax.ShapeDtypeStruct((Bp, Hp), jnp.float32),  # h_new
            jax.ShapeDtypeStruct((Bp, Hp), jnp.float32),  # c_new
        ),
        grid_spec=pltpu.PrefetchScalarGridSpec(
            num_scalar_prefetch=0,
            grid=(Vp // tv,),
            in_specs=[
                pl.BlockSpec((Bp, E + Hp), const),          # [x, h0]
                pl.BlockSpec((Bp, Hp), const),              # c0
                pl.BlockSpec((E + Hp, 4 * Hp), const),      # fused LSTM weight (f32)
                pl.BlockSpec((1, 4 * Hp), const),           # LSTM bias
                pl.BlockSpec((Hp, tv), lambda v: (0, v)),   # fc weight tile (bf16, streamed)
                pl.BlockSpec((1, tv), lambda v: (0, v)),    # fc bias tile
            ],
            out_specs=(
                pl.BlockSpec((Bp, 1), const),
                pl.BlockSpec((Bp, Hp), const),
                pl.BlockSpec((Bp, Hp), const),
            ),
            scratch_shapes=[
                pltpu.VMEM((Bp, Hp), jnp.bfloat16),         # h_new (bf16) for fc matmul
                pltpu.VMEM((Bp, 1), jnp.float32),           # running max value
                pltpu.VMEM((Bp, 1), jnp.int32),             # running argmax index
            ],
        ),
        compiler_params=pltpu.CompilerParams(
            dimension_semantics=("arbitrary",),             # vocab axis carries a reduction
            vmem_limit_bytes=packed["vmem_limit_bytes"],
        ),
    )(xh, c0_p, packed["w_cat"], packed["b_lstm"], packed["w_fc_t"], packed["b_fc"])

    out_ids = idx[:B, 0]                                        # (B,) int32
    new_features = packed["embed"][out_ids].reshape(1, B, E)    # embed(out.unsqueeze(0))
    h_out = h_new[:B, :H].reshape(1, B, H)
    c_out = c_new[:B, :H].reshape(1, B, H)
    return out_ids, new_features, (h_out, c_out)


def reference_forward(features, hidden, raw):
    """Pure-JAX reference mirroring the kernel numerics (f32 LSTM, bf16 fc weights)."""
    B, S, E = features.shape
    h0, c0 = hidden
    H = raw["w_hh"].shape[1]
    x = features.reshape(B, E)
    h0 = h0.reshape(B, H)
    c0 = c0.reshape(B, H)
    xh = jnp.concatenate([x, h0], axis=1)
    w_cat = jnp.concatenate([raw["w_ih"].T, raw["w_hh"].T], axis=0)
    b = (raw["b_ih"] + raw["b_hh"]).reshape(1, -1)
    gates = jnp.dot(xh, w_cat, precision=jax.lax.Precision.HIGHEST) + b
    i = jax.nn.sigmoid(gates[:, :H])
    f = jax.nn.sigmoid(gates[:, H:2 * H])
    g = jnp.tanh(gates[:, 2 * H:3 * H])
    o = jax.nn.sigmoid(gates[:, 3 * H:])
    c_new = f * c0 + i * g
    h_new = o * jnp.tanh(c_new)
    logits = jnp.dot(h_new.astype(jnp.bfloat16), raw["w_fc"].T.astype(jnp.bfloat16),
                     preferred_element_type=jnp.float32) + raw["b_fc"][None, :]
    ids = jnp.argmax(logits, axis=1).astype(jnp.int32)
    feat = raw["embed"][ids].reshape(1, B, E)
    return ids, feat, (h_new.reshape(1, B, H), c_new.reshape(1, B, H))


if __name__ == "__main__":
    batch = 2
    embed_size = 32
    hidden_size = 32
    vocab_size = 512
    tile_v = 128        # small tile so the vocab grid has several streamed steps

    key = jax.random.PRNGKey(0)
    kp, kx = jax.random.split(key)
    raw = init_params(kp, embed_size, hidden_size, vocab_size)
    packed = pack_params(raw, tv=tile_v)

    # features: (batch, seq=1, embed_size); hidden from init_hidden(batch): zeros
    features = jax.random.normal(kx, (batch, 1, embed_size), jnp.float32)
    hidden = (jnp.zeros((1, batch, hidden_size), jnp.float32),
              jnp.zeros((1, batch, hidden_size), jnp.float32))

    out_ids, new_feats, (h_new, c_new) = decoder_forward(features, hidden, packed)
    jax.block_until_ready((out_ids, new_feats, h_new, c_new))

    # verify against pure-JAX reference
    ref_ids, ref_feats, (ref_h, ref_c) = reference_forward(features, hidden, raw)
    assert np.array_equal(np.asarray(out_ids), np.asarray(ref_ids)), (out_ids, ref_ids)
    np.testing.assert_allclose(np.asarray(new_feats), np.asarray(ref_feats), atol=1e-5, rtol=1e-5)
    np.testing.assert_allclose(np.asarray(h_new), np.asarray(ref_h), atol=1e-5, rtol=1e-5)
    np.testing.assert_allclose(np.asarray(c_new), np.asarray(ref_c), atol=1e-5, rtol=1e-5)

    print("KERNEL_OK")
</pallas_src>

<mosaic_0001>
module attributes {stable_mosaic.version = 11 : i64} {
  func.func @decoder_step_kernel(%arg0: i32, %arg1: memref<8x160xf32, #tpu.memory_space<vmem>>, %arg2: memref<8x128xf32, #tpu.memory_space<vmem>>, %arg3: memref<160x512xf32, #tpu.memory_space<vmem>>, %arg4: memref<1x512xf32, #tpu.memory_space<vmem>>, %arg5: memref<128x128xbf16, #tpu.memory_space<vmem>>, %arg6: memref<1x128xf32, #tpu.memory_space<vmem>>, %arg7: memref<8x1xi32, #tpu.memory_space<vmem>>, %arg8: memref<8x128xf32, #tpu.memory_space<vmem>>, %arg9: memref<8x128xf32, #tpu.memory_space<vmem>>, %arg10: memref<8x128xbf16, #tpu.memory_space<vmem>>, %arg11: memref<8x1xf32, #tpu.memory_space<vmem>>, %arg12: memref<8x1xi32, #tpu.memory_space<vmem>>) attributes {dimension_semantics = [#tpu.dimension_semantics<arbitrary>], iteration_bounds = array<i64: 4>, scalar_prefetch = 0 : i64, scratch_operands = 3 : i64, tpu.core_type = #tpu.core_type<tc>, window_params = [{pipeline_mode = #tpu.pipeline_mode<synchronous>, transform_indices = @transform_0, window_bounds = array<i64: 8, 160>}, {pipeline_mode = #tpu.pipeline_mode<synchronous>, transform_indices = @transform_1, window_bounds = array<i64: 8, 128>}, {pipeline_mode = #tpu.pipeline_mode<synchronous>, transform_indices = @transform_2, window_bounds = array<i64: 160, 512>}, {pipeline_mode = #tpu.pipeline_mode<synchronous>, transform_indices = @transform_3, window_bounds = array<i64: 1, 512>}, {transform_indices = @transform_4, window_bounds = array<i64: 128, 128>}, {transform_indices = @transform_5, window_bounds = array<i64: 1, 128>}, {pipeline_mode = #tpu.pipeline_mode<synchronous>, transform_indices = @transform_6, window_bounds = array<i64: 8, 1>}, {pipeline_mode = #tpu.pipeline_mode<synchronous>, transform_indices = @transform_7, window_bounds = array<i64: 8, 128>}, {pipeline_mode = #tpu.pipeline_mode<synchronous>, transform_indices = @transform_8, window_bounds = array<i64: 8, 128>}]} {
    %c0_i32 = arith.constant 0 : i32
    %0 = arith.cmpi eq, %arg0, %c0_i32 : i32
    %1 = arith.extui %0 : i1 to i32
    %c0_i32_0 = arith.constant 0 : i32
    %2 = arith.cmpi ne, %1, %c0_i32_0 : i32
    scf.if %2 {
      %c0_20 = arith.constant 0 : index
      %c0_21 = arith.constant 0 : index
      %32 = vector.load %arg1[%c0_20, %c0_21] : memref<8x160xf32, #tpu.memory_space<vmem>>, vector<8x160xf32>
      %c0_22 = arith.constant 0 : index
      %c0_23 = arith.constant 0 : index
      %33 = vector.load %arg3[%c0_22, %c0_23] : memref<160x512xf32, #tpu.memory_space<vmem>>, vector<160x512xf32>
      %cst_24 = arith.constant dense<0.000000e+00> : vector<8x512xf32>
      %34 = tpu.matmul %32, %33, %cst_24 {dimension_numbers = #tpu.dot_dimension_numbers<[1], [0], [0], [1], [0, 0, 1, 1], [], []>} : vector<8x160xf32>, vector<160x512xf32>, vector<8x512xf32> -> vector<8x512xf32>
      %c0_25 = arith.constant 0 : index
      %c0_26 = arith.constant 0 : index
      %35 = vector.load %arg4[%c0_25, %c0_26] : memref<1x512xf32, #tpu.memory_space<vmem>>, vector<1x512xf32>
      %36 = vector.broadcast %35 : vector<1x512xf32> to vector<8x512xf32>
      %37 = arith.addf %34, %36 : vector<8x512xf32>
      %38 = vector.extract_strided_slice %37 {offsets = [0, 0], sizes = [8, 128], strides = [1, 1]} : vector<8x512xf32> to vector<8x128xf32>
      %39 = arith.negf %38 : vector<8x128xf32>
      %40 = math.exp %39 : vector<8x128xf32>
      %cst_27 = arith.constant 1.000000e+00 : f32
      %41 = vector.broadcast %cst_27 : f32 to vector<8x128xf32>
      %42 = arith.addf %41, %40 : vector<8x128xf32>
      %43 = arith.divf %41, %42 : vector<8x128xf32>
      %44 = vector.extract_strided_slice %37 {offsets = [0, 128], sizes = [8, 128], strides = [1, 1]} : vector<8x512xf32> to vector<8x128xf32>
      %45 = arith.negf %44 : vector<8x128xf32>
      %46 = math.exp %45 : vector<8x128xf32>
      %cst_28 = arith.constant 1.000000e+00 : f32
      %47 = vector.broadcast %cst_28 : f32 to vector<8x128xf32>
      %48 = arith.addf %47, %46 : vector<8x128xf32>
      %49 = arith.divf %47, %48 : vector<8x128xf32>
      %50 = vector.extract_strided_slice %37 {offsets = [0, 256], sizes = [8, 128], strides = [1, 1]} : vector<8x512xf32> to vector<8x128xf32>
      %51 = math.tanh %50 : vector<8x128xf32>
      %52 = vector.extract_strided_slice %37 {offsets = [0, 384], sizes = [8, 128], strides = [1, 1]} : vector<8x512xf32> to vector<8x128xf32>
      %53 = arith.negf %52 : vector<8x128xf32>
      %54 = math.exp %53 : vector<8x128xf32>
      %cst_29 = arith.constant 1.000000e+00 : f32
      %55 = vector.broadcast %cst_29 : f32 to vector<8x128xf32>
      %56 = arith.addf %55, %54 : vector<8x128xf32>
      %57 = arith.divf %55, %56 : vector<8x128xf32>
      %c0_30 = arith.constant 0 : index
      %c0_31 = arith.constant 0 : index
      %58 = vector.load %arg2[%c0_30, %c0_31] : memref<8x128xf32, #tpu.memory_space<vmem>>, vector<8x128xf32>
      %59 = arith.mulf %49, %58 : vector<8x128xf32>
      %60 = arith.mulf %43, %51 : vector<8x128xf32>
      %61 = arith.addf %59, %60 : vector<8x128xf32>
      %62 = math.tanh %61 : vector<8x128xf32>
      %63 = arith.mulf %57, %62 : vector<8x128xf32>
      %c0_32 = arith.constant 0 : index
      %c0_33 = arith.constant 0 : index
      %64 = vector.load %arg8[%c0_32, %c0_33] : memref<8x128xf32, #tpu.memory_space<vmem>>, vector<8x128xf32>
      tpu.vector_store %arg8[%c0_32, %c0_33], %63 {strides = array<i32>} : memref<8x128xf32, #tpu.memory_space<vmem>>, vector<8x128xf32>,
      %c0_34 = arith.constant 0 : index
      %c0_35 = arith.constant 0 : index
      %65 = vector.load %arg9[%c0_34, %c0_35] : memref<8x128xf32, #tpu.memory_space<vmem>>, vector<8x128xf32>
      tpu.vector_store %arg9[%c0_34, %c0_35], %61 {strides = array<i32>} : memref<8x128xf32, #tpu.memory_space<vmem>>, vector<8x128xf32>,
      %66 = arith.truncf %63 : vector<8x128xf32> to vector<8x128xbf16>
      %c0_36 = arith.constant 0 : index
      %c0_37 = arith.constant 0 : index
      %67 = vector.load %arg10[%c0_36, %c0_37] : memref<8x128xbf16, #tpu.memory_space<vmem>>, vector<8x128xbf16>
      tpu.vector_store %arg10[%c0_36, %c0_37], %66 {strides = array<i32>} : memref<8x128xbf16, #tpu.memory_space<vmem>>, vector<8x128xbf16>,
      %cst_38 = arith.constant 0xFF800000 : f32
      %68 = vector.broadcast %cst_38 : f32 to vector<8x1xf32>
      %c0_39 = arith.constant 0 : index
      %c0_40 = arith.constant 0 : index
      %69 = vector.load %arg11[%c0_39, %c0_40] : memref<8x1xf32, #tpu.memory_space<vmem>>, vector<8x1xf32>
      tpu.vector_store %arg11[%c0_39, %c0_40], %68 {strides = array<i32>} : memref<8x1xf32, #tpu.memory_space<vmem>>, vector<8x1xf32>,
      %c0_i32_41 = arith.constant 0 : i32
      %70 = vector.broadcast %c0_i32_41 : i32 to vector<8x1xi32>
      %c0_42 = arith.constant 0 : index
      %c0_43 = arith.constant 0 : index
      %71 = vector.load %arg12[%c0_42, %c0_43] : memref<8x1xi32, #tpu.memory_space<vmem>>, vector<8x1xi32>
      tpu.vector_store %arg12[%c0_42, %c0_43], %70 {strides = array<i32>} : memref<8x1xi32, #tpu.memory_space<vmem>>, vector<8x1xi32>,
    } else {
    }
    %c0 = arith.constant 0 : index
    %c0_1 = arith.constant 0 : index
    %3 = vector.load %arg10[%c0, %c0_1] : memref<8x128xbf16, #tpu.memory_space<vmem>>, vector<8x128xbf16>
    %c0_2 = arith.constant 0 : index
    %c0_3 = arith.constant 0 : index
    %4 = vector.load %arg5[%c0_2, %c0_3] : memref<128x128xbf16, #tpu.memory_space<vmem>>, vector<128x128xbf16>
    %cst = arith.constant dense<0.000000e+00> : vector<8x128xf32>
    %5 = tpu.matmul %3, %4, %cst {dimension_numbers = #tpu.dot_dimension_numbers<[1], [0], [0], [1], [0, 0, 1, 1], [], []>} : vector<8x128xbf16>, vector<128x128xbf16>, vector<8x128xf32> -> vector<8x128xf32>
    %c0_4 = arith.constant 0 : index
    %c0_5 = arith.constant 0 : index
    %6 = vector.load %arg6[%c0_4, %c0_5] : memref<1x128xf32, #tpu.memory_space<vmem>>, vector<1x128xf32>
    %7 = vector.broadcast %6 : vector<1x128xf32> to vector<8x128xf32>
    %8 = arith.addf %5, %7 : vector<8x128xf32>
    %cst_6 = arith.constant dense<0xFF800000> : vector<8xf32>
    %9 = vector.multi_reduction <maximumf>, %8, %cst_6 [1] : vector<8x128xf32> to vector<8xf32>
    %10 = vector.shape_cast %9 : vector<8xf32> to vector<8x1xf32>
    %11 = tpu.iota {dimensions = array<i32: 1>} : vector<8x128xi32>
    %12 = vector.broadcast %10 : vector<8x1xf32> to vector<8x128xf32>
    %13 = arith.cmpf oeq, %8, %12 : vector<8x128xf32>
    %c128_i32 = arith.constant 128 : i32
    %14 = vector.broadcast %c128_i32 : i32 to vector<8x128xi32>
    %15 = arith.select %13, %11, %14 : vector<8x128xi1>, vector<8x128xi32>
    %cst_7 = arith.constant dense<2147483647> : vector<8xi32>
    %16 = vector.multi_reduction <minsi>, %15, %cst_7 [1] : vector<8x128xi32> to vector<8xi32>
    %17 = vector.shape_cast %16 : vector<8xi32> to vector<8x1xi32>
    %c128_i32_8 = arith.constant 128 : i32
    %18 = arith.muli %arg0, %c128_i32_8 : i32
    %19 = vector.broadcast %18 : i32 to vector<8x1xi32>
    %20 = arith.addi %17, %19 : vector<8x1xi32>
    %c0_9 = arith.constant 0 : index
    %c0_10 = arith.constant 0 : index
    %21 = vector.load %arg11[%c0_9, %c0_10] : memref<8x1xf32, #tpu.memory_space<vmem>>, vector<8x1xf32>
    %22 = arith.cmpf ogt, %10, %21 : vector<8x1xf32>
    %c0_11 = arith.constant 0 : index
    %c0_12 = arith.constant 0 : index
    %23 = vector.load %arg12[%c0_11, %c0_12] : memref<8x1xi32, #tpu.memory_space<vmem>>, vector<8x1xi32>
    %24 = arith.select %22, %20, %23 : vector<8x1xi1>, vector<8x1xi32>
    %c0_13 = arith.constant 0 : index
    %c0_14 = arith.constant 0 : index
    %25 = vector.load %arg12[%c0_13, %c0_14] : memref<8x1xi32, #tpu.memory_space<vmem>>, vector<8x1xi32>
    tpu.vector_store %arg12[%c0_13, %c0_14], %24 {strides = array<i32>} : memref<8x1xi32, #tpu.memory_space<vmem>>, vector<8x1xi32>,
    %c0_15 = arith.constant 0 : index
    %c0_16 = arith.constant 0 : index
    %26 = vector.load %arg11[%c0_15, %c0_16] : memref<8x1xf32, #tpu.memory_space<vmem>>, vector<8x1xf32>
    %27 = arith.select %22, %10, %26 : vector<8x1xi1>, vector<8x1xf32>
    %c0_17 = arith.constant 0 : index
    %c0_18 = arith.constant 0 : index
    %28 = vector.load %arg11[%c0_17, %c0_18] : memref<8x1xf32, #tpu.memory_space<vmem>>, vector<8x1xf32>
    tpu.vector_store %arg11[%c0_17, %c0_18], %27 {strides = array<i32>} : memref<8x1xf32, #tpu.memory_space<vmem>>, vector<8x1xf32>,
    %c3_i32 = arith.constant 3 : i32
    %29 = arith.cmpi eq, %arg0, %c3_i32 : i32
    %30 = arith.extui %29 : i1 to i32
    %c0_i32_19 = arith.constant 0 : i32
    %31 = arith.cmpi ne, %30, %c0_i32_19 : i32
    scf.if %31 {
      %c0_20 = arith.constant 0 : index
      %c0_21 = arith.constant 0 : index
      %32 = vector.load %arg12[%c0_20, %c0_21] : memref<8x1xi32, #tpu.memory_space<vmem>>, vector<8x1xi32>
      %c0_22 = arith.constant 0 : index
      %c0_23 = arith.constant 0 : index
      %33 = vector.load %arg7[%c0_22, %c0_23] : memref<8x1xi32, #tpu.memory_space<vmem>>, vector<8x1xi32>
      tpu.vector_store %arg7[%c0_22, %c0_23], %32 {strides = array<i32>} : memref<8x1xi32, #tpu.memory_space<vmem>>, vector<8x1xi32>,
    } else {
    }
    return
  }
  func.func @transform_0(%arg0: i32) -> (i32, i32) {
    %c0_i32 = arith.constant 0 : i32
    %c0_i32_0 = arith.constant 0 : i32
    %c0_i32_1 = arith.constant 0 : i32
    return %c0_i32, %c0_i32_0 : i32, i32
  }
  func.func @transform_1(%arg0: i32) -> (i32, i32) {
    %c0_i32 = arith.constant 0 : i32
    %c0_i32_0 = arith.constant 0 : i32
    %c0_i32_1 = arith.constant 0 : i32
    return %c0_i32, %c0_i32_0 : i32, i32
  }
  func.func @transform_2(%arg0: i32) -> (i32, i32) {
    %c0_i32 = arith.constant 0 : i32
    %c0_i32_0 = arith.constant 0 : i32
    %c0_i32_1 = arith.constant 0 : i32
    return %c0_i32, %c0_i32_0 : i32, i32
  }
  func.func @transform_3(%arg0: i32) -> (i32, i32) {
    %c0_i32 = arith.constant 0 : i32
    %c0_i32_0 = arith.constant 0 : i32
    %c0_i32_1 = arith.constant 0 : i32
    return %c0_i32, %c0_i32_0 : i32, i32
  }
  func.func @transform_4(%arg0: i32) -> (i32, i32) {
    %c0_i32 = arith.constant 0 : i32
    %c0_i32_0 = arith.constant 0 : i32
    return %c0_i32, %arg0 : i32, i32
  }
  func.func @transform_5(%arg0: i32) -> (i32, i32) {
    %c0_i32 = arith.constant 0 : i32
    %c0_i32_0 = arith.constant 0 : i32
    return %c0_i32, %arg0 : i32, i32
  }
  func.func @transform_6(%arg0: i32) -> (i32, i32) {
    %c0_i32 = arith.constant 0 : i32
    %c0_i32_0 = arith.constant 0 : i32
    %c0_i32_1 = arith.constant 0 : i32
    return %c0_i32, %c0_i32_0 : i32, i32
  }
  func.func @transform_7(%arg0: i32) -> (i32, i32) {
    %c0_i32 = arith.constant 0 : i32
    %c0_i32_0 = arith.constant 0 : i32
    %c0_i32_1 = arith.constant 0 : i32
    return %c0_i32, %c0_i32_0 : i32, i32
  }
  func.func @transform_8(%arg0: i32) -> (i32, i32) {
    %c0_i32 = arith.constant 0 : i32
    %c0_i32_0 = arith.constant 0 : i32
    %c0_i32_1 = arith.constant 0 : i32
    return %c0_i32, %c0_i32_0 : i32, i32
  }
}

</mosaic_0001>

<llo_original>
// kernel: tpu_custom_call.1
$region0: #{tpu_custom_call.1}
  #allocation0 [shape = 'u32[]', space=smem, size = 0x4, offset = 0x4, fixed_abs, tag = 'smem constant byte address 0x4 - core index']
  #allocation1 [shape = 'u32[144,128]{1,0:T(1,128)}', space=vmem, size = 0x12000, scoped, tag = 'internal scratch']
  #allocation2 [shape = 'bf16[8,128]{1,0:T(8,128)(2,1)}', space=vmem, size = 0x800, scoped, tag = 'scratch operand']
  #allocation3 [shape = 'f32[8,1]{1,0:T(8,128)}', space=vmem, size = 0x1000, scoped, tag = 'scratch operand']
  #allocation4 [shape = 's32[8,1]{1,0:T(8,128)}', space=vmem, size = 0x1000, scoped, tag = 'scratch operand']
  %s0 = inlined_call_operand.hbm [shape: f32[8,160], index: 0, kind: input, shape index: {}]
  %s1 = inlined_call_operand.hbm [shape: f32[8,128], index: 1, kind: input, shape index: {}]
  %s2 = inlined_call_operand.hbm [shape: f32[160,512], index: 2, kind: input, shape index: {}]
  %s3 = inlined_call_operand.vmem [shape: f32[1,512], index: 3, kind: input, shape index: {}]
  %s4 = inlined_call_operand.hbm [shape: bf16[128,512], index: 4, kind: input, shape index: {}]
  %s5 = inlined_call_operand.vmem [shape: f32[1,512], index: 5, kind: input, shape index: {}]
  %s6 = inlined_call_operand.vmem [shape: s32[8,1], index: 6, kind: output, shape index: {0}]
  %s7 = inlined_call_operand.hbm [shape: f32[8,128], index: 7, kind: output, shape index: {1}]
  %s8 = inlined_call_operand.hbm [shape: f32[8,128], index: 8, kind: output, shape index: {2}]
  %9 = xla_tuple %s6, %s7, %s8
  %s10 = sld [smem:[#allocation0]]
  $region97: #{tpu_custom_call.1} parent=0
    _
  %s12 = ssub.s32 1, %s10
  %s13 = scalar_select 0, %s12, %s10
  $region1: #{tpu_custom_call.1} parent=0
    #allocation5 [shape = 'u8[8192]{0}', space=vmem, size = 0x2000, scoped, tag = 'input window, operand 0, single buffered']
    #allocation6 [shape = 's32[2]{0}', space=sflag, size = 0x8, scoped, tag = 'scoped memory for tpu_custom_call.1']
    #allocation7 [shape = 's32[2]{0}', space=sflag, size = 0x8, scoped, tag = 'scoped memory for tpu_custom_call.1']
    #allocation8 [shape = 'u8[4096]{0}', space=vmem, size = 0x1000, scoped, tag = 'input window, operand 1, single buffered']
    #allocation9 [shape = 's32[1]{0}', space=sflag, size = 0x4, scoped, tag = 'scoped memory for tpu_custom_call.1']
    #allocation10 [shape = 'u8[327680]{0}', space=vmem, size = 0x50000, scoped, tag = 'input window, operand 2, single buffered']
    #allocation11 [shape = 'u8[65536]{0}', space=vmem, size = 0x10000, scoped, tag = 'input window, operand 4']
    #allocation12 [shape = 's32[2]{0}', space=sflag, size = 0x8, scoped, tag = 'scoped memory for tpu_custom_call.1']
    #allocation13 [shape = 'u8[4096]{0}', space=vmem, size = 0x1000, scoped, tag = 'output window, operand 1, single buffered']
    #allocation14 [shape = 'u8[4096]{0}', space=vmem, size = 0x1000, scoped, tag = 'output window, operand 2, single buffered']
    #allocation15 [shape = 's32[1]{0}', space=sflag, size = 0x4, scoped, tag = 'scoped memory for tpu_custom_call.1']
    %14 = vsyncpa [#allocation6], 0
    %15 = vsyncpa [#allocation9], 0
    %16 = vsyncpa [#allocation12], 0
    %s17 = scalar_lea.sflag [#allocation12], 1
    %18 = vsyncpa %s17, 0
    %19 = vsyncpa [#allocation7], 0
    %20 = vsyncpa [#allocation15], 0
    loop: start=0, step=1, limit=6
    $region2: #{tpu_custom_call.1} parent=1 // loop_pre_header
      _
    $region3: #{tpu_custom_call.1} parent=1 // loop_header
      %s22 = sphi 0, %s26
      %p23 = scmp.ge.s32.totalorder %s22, 6
      %s30 = sphi 0, %s30
      %s32 = sphi 0, %s30
      %s33 = sphi 0, %s32
      %s47 = sphi 0, %s33
      %s51 = sphi 0, %s51
      %s53 = sphi 0, %s51
      %s54 = sphi 0, %s53
      %s68 = sphi 0, %s54
      %s72 = sphi 0, %s72
      %s74 = sphi 0, %s72
      %s75 = sphi 0, %s74
      %s89 = sphi 0, %s75
      %s93 = sphi 0, %s93
      %s95 = sphi 0, %s93
      %s96 = sphi 0, %s95
      %s110 = sphi 0, %s96
      %s116 = sphi 0, %s118
      %s119 = sphi 0, %s116
      %s120 = sphi 0, %s119
      %s136 = sphi 0, %s120
      %s142 = sphi 0, %s144
      %s145 = sphi 0, %s142
      %s146 = sphi 0, %s145
      %s162 = sphi 0, %s146
      %s166 = sphi 0, %s166
      %s168 = sphi 0, %s166
      %s169 = sphi 0, %s168
      %s183 = sphi 0, %s169
      %s187 = sphi 0, %s187
      %s189 = sphi 0, %s187
      %s190 = sphi 0, %s189
      %s204 = sphi 0, %s190
      %s208 = sphi 0, %s208
      %s210 = sphi 0, %s208
      %s211 = sphi 0, %s210
      %s225 = sphi 0, %s211
    $region4: #{tpu_custom_call.1} parent=1 // loop_header_branch
      %25 = sbr.rel (%p23) target = $region8
    $region5: #{tpu_custom_call.1} parent=1 // loop_body
      %s27 = ssub.s32 %s22, 1
      %s28 = ssub.s32 %s22, 2
      %s29 = sadd.s32 %s22, 1
      %s31 = sadd.s32 %s30, 1
      %p34 = scmp.eq.s32.totalorder %s22, 3
      %p35 = scmp.ne.s32.totalorder %s30, %s32
      %p36 = scmp.eq.s32.totalorder %s22, 0
      %p37 = por %p35, %p36
      %p38 = scmp.ne.s32.totalorder %s30, %s32
      %p39 = scmp.eq.s32.totalorder %s27, 3
      %p40 = por %p38, %p39
      %p41 = scmp.ne.s32.totalorder %s32, %s33
      %p42 = scmp.eq.s32.totalorder %s27, 0
      %p43 = por %p41, %p42
      %p44 = scmp.ne.s32.totalorder %s32, %s33
      %p45 = scmp.eq.s32.totalorder %s28, 3
      %p46 = por %p44, %p45
      %p48 = scmp.ne.s32.totalorder %s33, %s47
      %p49 = scmp.eq.s32.totalorder %s28, 0
      %p50 = por %p48, %p49
      %s52 = sadd.s32 %s51, 1
      %p55 = scmp.eq.s32.totalorder %s22, 3
      %p56 = scmp.ne.s32.totalorder %s51, %s53
      %p57 = scmp.eq.s32.totalorder %s22, 0
      %p58 = por %p56, %p57
      %p59 = scmp.ne.s32.totalorder %s51, %s53
      %p60 = scmp.eq.s32.totalorder %s27, 3
      %p61 = por %p59, %p60
      %p62 = scmp.ne.s32.totalorder %s53, %s54
      %p63 = scmp.eq.s32.totalorder %s27, 0
      %p64 = por %p62, %p63
      %p65 = scmp.ne.s32.totalorder %s53, %s54
      %p66 = scmp.eq.s32.totalorder %s28, 3
      %p67 = por %p65, %p66
      %p69 = scmp.ne.s32.totalorder %s54, %s68
      %p70 = scmp.eq.s32.totalorder %s28, 0
      %p71 = por %p69, %p70
      %s73 = sadd.s32 %s72, 1
      %p76 = scmp.eq.s32.totalorder %s22, 3
      %p77 = scmp.ne.s32.totalorder %s72, %s74
      %p78 = scmp.eq.s32.totalorder %s22, 0
      %p79 = por %p77, %p78
      %p80 = scmp.ne.s32.totalorder %s72, %s74
      %p81 = scmp.eq.s32.totalorder %s27, 3
      %p82 = por %p80, %p81
      %p83 = scmp.ne.s32.totalorder %s74, %s75
      %p84 = scmp.eq.s32.totalorder %s27, 0
      %p85 = por %p83, %p84
      %p86 = scmp.ne.s32.totalorder %s74, %s75
      %p87 = scmp.eq.s32.totalorder %s28, 3
      %p88 = por %p86, %p87
      %p90 = scmp.ne.s32.totalorder %s75, %s89
      %p91 = scmp.eq.s32.totalorder %s28, 0
      %p92 = por %p90, %p91
      %s94 = sadd.s32 %s93, 1
      %p97 = scmp.eq.s32.totalorder %s22, 3
      %p98 = scmp.ne.s32.totalorder %s93, %s95
      %p99 = scmp.eq.s32.totalorder %s22, 0
      %p100 = por %p98, %p99
      %p101 = scmp.ne.s32.totalorder %s93, %s95
      %p102 = scmp.eq.s32.totalorder %s27, 3
      %p103 = por %p101, %p102
      %p104 = scmp.ne.s32.totalorder %s95, %s96
      %p105 = scmp.eq.s32.totalorder %s27, 0
      %p106 = por %p104, %p105
      %p107 = scmp.ne.s32.totalorder %s95, %s96
      %p108 = scmp.eq.s32.totalorder %s28, 3
      %p109 = por %p107, %p108
      %p111 = scmp.ne.s32.totalorder %s96, %s110
      %p112 = scmp.eq.s32.totalorder %s28, 0
      %p113 = por %p111, %p112
      %s114 = ssub.s32 %s22, %s29
      %p115 = scmp.eq.s32.totalorder %s114, 0
      %s117 = sadd.s32 %s116, 1
      %s118 = scalar_select %p115, %s116, %s117
      %p121 = pneg %p115
      %p122 = scmp.eq.s32.totalorder %s22, 3
      %p123 = por %p121, %p122
      %p124 = scmp.ne.s32.totalorder %s116, %s119
      %p125 = scmp.eq.s32.totalorder %s22, 0
      %p126 = por %p124, %p125
      %p127 = scmp.ne.s32.totalorder %s116, %s119
      %p128 = scmp.eq.s32.totalorder %s27, 3
      %p129 = por %p127, %p128
      %p130 = scmp.ne.s32.totalorder %s119, %s120
      %p131 = scmp.eq.s32.totalorder %s27, 0
      %p132 = por %p130, %p131
      %p133 = scmp.ne.s32.totalorder %s119, %s120
      %p134 = scmp.eq.s32.totalorder %s28, 3
      %p135 = por %p133, %p134
      %p137 = scmp.ne.s32.totalorder %s120, %s136
      %p138 = scmp.eq.s32.totalorder %s28, 0
      %p139 = por %p137, %p138
      %s140 = ssub.s32 %s22, %s29
      %p141 = scmp.eq.s32.totalorder %s140, 0
      %s143 = sadd.s32 %s142, 1
      %s144 = scalar_select %p141, %s142, %s143
      %p147 = pneg %p141
      %p148 = scmp.eq.s32.totalorder %s22, 3
      %p149 = por %p147, %p148
      %p150 = scmp.ne.s32.totalorder %s142, %s145
      %p151 = scmp.eq.s32.totalorder %s22, 0
      %p152 = por %p150, %p151
      %p153 = scmp.ne.s32.totalorder %s142, %s145
      %p154 = scmp.eq.s32.totalorder %s27, 3
      %p155 = por %p153, %p154
      %p156 = scmp.ne.s32.totalorder %s145, %s146
      %p157 = scmp.eq.s32.totalorder %s27, 0
      %p158 = por %p156, %p157
      %p159 = scmp.ne.s32.totalorder %s145, %s146
      %p160 = scmp.eq.s32.totalorder %s28, 3
      %p161 = por %p159, %p160
      %p163 = scmp.ne.s32.totalorder %s146, %s162
      %p164 = scmp.eq.s32.totalorder %s28, 0
      %p165 = por %p163, %p164
      %s167 = sadd.s32 %s166, 1
      %p170 = scmp.eq.s32.totalorder %s22, 3
      %p171 = scmp.ne.s32.totalorder %s166, %s168
      %p172 = scmp.eq.s32.totalorder %s22, 0
      %p173 = por %p171, %p172
      %p174 = scmp.ne.s32.totalorder %s166, %s168
      %p175 = scmp.eq.s32.totalorder %s27, 3
      %p176 = por %p174, %p175
      %p177 = scmp.ne.s32.totalorder %s168, %s169
      %p178 = scmp.eq.s32.totalorder %s27, 0
      %p179 = por %p177, %p178
      %p180 = scmp.ne.s32.totalorder %s168, %s169
      %p181 = scmp.eq.s32.totalorder %s28, 3
      %p182 = por %p180, %p181
      %p184 = scmp.ne.s32.totalorder %s169, %s183
      %p185 = scmp.eq.s32.totalorder %s28, 0
      %p186 = por %p184, %p185
      %s188 = sadd.s32 %s187, 1
      %p191 = scmp.eq.s32.totalorder %s22, 3
      %p192 = scmp.ne.s32.totalorder %s187, %s189
      %p193 = scmp.eq.s32.totalorder %s22, 0
      %p194 = por %p192, %p193
      %p195 = scmp.ne.s32.totalorder %s187, %s189
      %p196 = scmp.eq.s32.totalorder %s27, 3
      %p197 = por %p195, %p196
      %p198 = scmp.ne.s32.totalorder %s189, %s190
      %p199 = scmp.eq.s32.totalorder %s27, 0
      %p200 = por %p198, %p199
      %p201 = scmp.ne.s32.totalorder %s189, %s190
      %p202 = scmp.eq.s32.totalorder %s28, 3
      %p203 = por %p201, %p202
      %p205 = scmp.ne.s32.totalorder %s190, %s204
      %p206 = scmp.eq.s32.totalorder %s28, 0
      %p207 = por %p205, %p206
      %s209 = sadd.s32 %s208, 1
      %p212 = scmp.eq.s32.totalorder %s22, 3
      %p213 = scmp.ne.s32.totalorder %s208, %s210
      %p214 = scmp.eq.s32.totalorder %s22, 0
      %p215 = por %p213, %p214
      %p216 = scmp.ne.s32.totalorder %s208, %s210
      %p217 = scmp.eq.s32.totalorder %s27, 3
      %p218 = por %p216, %p217
      %p219 = scmp.ne.s32.totalorder %s210, %s211
      %p220 = scmp.eq.s32.totalorder %s27, 0
      %p221 = por %p219, %p220
      %p222 = scmp.ne.s32.totalorder %s210, %s211
      %p223 = scmp.eq.s32.totalorder %s28, 3
      %p224 = por %p222, %p223
      %p226 = scmp.ne.s32.totalorder %s211, %s225
      %p227 = scmp.eq.s32.totalorder %s28, 0
      %p228 = por %p226, %p227
      %p229 = scmp.le.s32.totalorder 1, %s22
      %p230 = scmp.lt.s32.totalorder %s22, 5
      %p231 = pnand %p229, %p230
      %p232 = pneg %p231
      // Predicated region
      $region9: #{tpu_custom_call.1} parent=5 // pred_check
        _
      $region10: #{tpu_custom_call.1} parent=5 // pred_check_branch
        %234 = sbr.rel (%p231) target = $region12
      $region11: #{tpu_custom_call.1} parent=5 // pred_region
        %s235 = ssub.s32 %s22, 1
        // Predicated region
        $region13: #{tpu_custom_call.1} parent=11 // pred_check
          %p236 = pneg %p43
        $region14: #{tpu_custom_call.1} parent=11 // pred_check_branch
          %238 = sbr.rel (%p236) target = $region16
        $region15: #{tpu_custom_call.1} parent=11 // pred_region
          %s240 = ssub.s32 256, 256
          %241 = vsyncadd [#allocation6], %s240
          %s243 = sshll.u32 [#allocation5], 4
          %s244 = int_to_ptr.vmem [resolvable:$true] %s243
          %246 = dma.hbm_to_vmem [thread:$0]  %s0, 256, %s244, [#allocation6]
        $region16: #{tpu_custom_call.1} parent=11 // pred_fallthru
          _
        // Predicated region
        $region17: #{tpu_custom_call.1} parent=11 // pred_check
          %p247 = pneg %p64
        $region18: #{tpu_custom_call.1} parent=11 // pred_check_branch
          %249 = sbr.rel (%p247) target = $region20
        $region19: #{tpu_custom_call.1} parent=11 // pred_region
          %s251 = ssub.s32 128, 128
          %252 = vsyncadd [#allocation9], %s251
          %s254 = sshll.u32 [#allocation8], 4
          %s255 = int_to_ptr.vmem [resolvable:$true] %s254
          %257 = dma.hbm_to_vmem [thread:$0]  %s1, 128, %s255, [#allocation9]
        $region20: #{tpu_custom_call.1} parent=11 // pred_fallthru
          _
        // Predicated region
        $region21: #{tpu_custom_call.1} parent=11 // pred_check
          %p258 = pneg %p85
        $region22: #{tpu_custom_call.1} parent=11 // pred_check_branch
          %260 = sbr.rel (%p258) target = $region24
        $region23: #{tpu_custom_call.1} parent=11 // pred_region
          %s262 = ssub.s32 10240, 10240
          %263 = vsyncadd [#allocation9], %s262
          %s264 = sshll.u32 [#allocation10], 4
          %s265 = int_to_ptr.vmem [resolvable:$true] %s264
          %270 = dma.hbm_to_vmem [thread:$0]  %s2, 10240, %s265, [#allocation9], 512, 512, 32
        $region24: #{tpu_custom_call.1} parent=11 // pred_fallthru
          _
        // Predicated region
        $region25: #{tpu_custom_call.1} parent=11 // pred_check
          %p271 = pneg %p106
        $region26: #{tpu_custom_call.1} parent=11 // pred_check_branch
          %273 = sbr.rel (%p271) target = $region28
        $region27: #{tpu_custom_call.1} parent=11 // pred_region
          _
        $region28: #{tpu_custom_call.1} parent=11 // pred_fallthru
          _
      $region12: #{tpu_custom_call.1} parent=5 // pred_fallthru
        _
      %p274 = scmp.lt.s32.totalorder %s22, 4
      // Predicated region
      $region29: #{tpu_custom_call.1} parent=5 // pred_check
        %p275 = pneg %p274
      $region30: #{tpu_custom_call.1} parent=5 // pred_check_branch
        %277 = sbr.rel (%p275) target = $region32
      $region31: #{tpu_custom_call.1} parent=5 // pred_region
        // Predicated region
        $region33: #{tpu_custom_call.1} parent=31 // pred_check
          %p278 = pneg %p126
        $region34: #{tpu_custom_call.1} parent=31 // pred_check_branch
          %280 = sbr.rel (%p278) target = $region36
        $region35: #{tpu_custom_call.1} parent=31 // pred_region
          %s281 = sand.u32 %s116, 1
          %s282 = scalar_lea.sflag [#allocation12], %s281
          %s283 = sand.u32 %s116, 1
          %s284 = smul.addr %s283, 64
          %s285 = scalar_lea.vmem [#allocation11], %s284
          %s287 = ssub.s32 1024, 1024
          %288 = vsyncadd %s282, %s287
          %s289 = smul.addr %s22, 64
          %s290 = scalar_lea.hbm %s4, %s289
          %s291 = sshll.u32 %s285, 4
          %s292 = int_to_ptr.vmem [resolvable:$true] %s291
          %297 = dma.hbm_to_vmem [thread:$0]  %s290, 1024, %s292, %s282, 256, 64, 4
        $region36: #{tpu_custom_call.1} parent=31 // pred_fallthru
          _
        // Predicated region
        $region37: #{tpu_custom_call.1} parent=31 // pred_check
          %p298 = pneg %p152
        $region38: #{tpu_custom_call.1} parent=31 // pred_check_branch
          %300 = sbr.rel (%p298) target = $region40
        $region39: #{tpu_custom_call.1} parent=31 // pred_region
          %p301 = scmp.lt.s32.totalorder %s22, 3
          %s302 = scalar_select %p301, %s22, 3
          %s303 = scalar_lea.vmem %s5, %s302
        $region40: #{tpu_custom_call.1} parent=31 // pred_fallthru
          _
      $region32: #{tpu_custom_call.1} parent=5 // pred_fallthru
        _
      %p304 = scmp.le.s32.totalorder 1, %s22
      %p305 = scmp.lt.s32.totalorder %s22, 5
      %p306 = pnand %p304, %p305
      %p307 = pneg %p306
      // Predicated region
      $region41: #{tpu_custom_call.1} parent=5 // pred_check
        _
      $region42: #{tpu_custom_call.1} parent=5 // pred_check_branch
        %309 = sbr.rel (%p306) target = $region44
      $region43: #{tpu_custom_call.1} parent=5 // pred_region
        %s310 = ssub.s32 %s22, 1
        // Predicated region
        $region45: #{tpu_custom_call.1} parent=43 // pred_check
          %p311 = pneg %p43
        $region46: #{tpu_custom_call.1} parent=43 // pred_check_branch
          %313 = sbr.rel (%p311) target = $region48
        $region47: #{tpu_custom_call.1} parent=43 // pred_region
          %314 = dma.done [#allocation6], 256
        $region48: #{tpu_custom_call.1} parent=43 // pred_fallthru
          _
        // Predicated region
        $region49: #{tpu_custom_call.1} parent=43 // pred_check
          %p315 = pneg %p64
        $region50: #{tpu_custom_call.1} parent=43 // pred_check_branch
          %317 = sbr.rel (%p315) target = $region52
        $region51: #{tpu_custom_call.1} parent=43 // pred_region
          %318 = dma.done [#allocation9], 128
        $region52: #{tpu_custom_call.1} parent=43 // pred_fallthru
          _
        // Predicated region
        $region53: #{tpu_custom_call.1} parent=43 // pred_check
          %p319 = pneg %p85
        $region54: #{tpu_custom_call.1} parent=43 // pred_check_branch
          %321 = sbr.rel (%p319) target = $region56
        $region55: #{tpu_custom_call.1} parent=43 // pred_region
          %322 = dma.done [#allocation9], 10240
        $region56: #{tpu_custom_call.1} parent=43 // pred_fallthru
          _
        %s323 = sand.u32 %s119, 1
        %s324 = scalar_lea.sflag [#allocation12], %s323
        %s325 = sand.u32 %s119, 1
        %s326 = smul.addr %s325, 64
        %s327 = scalar_lea.vmem [#allocation11], %s326
        // Predicated region
        $region57: #{tpu_custom_call.1} parent=43 // pred_check
          %p328 = pneg %p132
        $region58: #{tpu_custom_call.1} parent=43 // pred_check_branch
          %330 = sbr.rel (%p328) target = $region60
        $region59: #{tpu_custom_call.1} parent=43 // pred_region
          %331 = dma.done %s324, 1024
        $region60: #{tpu_custom_call.1} parent=43 // pred_fallthru
          _
        %p332 = pneg %p43
        %p333 = pneg %p40
        %p334 = pneg %p64
        %p335 = pneg %p61
        %p336 = pneg %p85
        %p337 = pneg %p82
        %p338 = pneg %p106
        %p339 = pneg %p103
        %s340 = sand.u32 %s119, 1
        %s341 = scalar_lea.sflag [#allocation12], %s340
        %s342 = sand.u32 %s119, 1
        %s343 = smul.addr %s342, 64
        %s344 = scalar_lea.vmem [#allocation11], %s343
        %p345 = pneg %p132
        %p346 = pneg %p129
        %p347 = scmp.lt.s32.totalorder %s27, 3
        %s348 = scalar_select %p347, %s27, 3
        %s349 = scalar_lea.vmem %s5, %s348
        %p350 = pneg %p158
        %p351 = pneg %p155
        %p352 = pneg %p179
        %p353 = pneg %p176
        %p354 = pneg %p200
        %p355 = pneg %p197
        %p356 = pneg %p221
        %p357 = pneg %p218
        %p358 = scmp.lt.s32.totalorder %s27, 3
        %s359 = scalar_select %p358, %s27, 3
        %s360 = scalar_lea.vmem %s5, %s359
        %p362 = scmp.eq.s32.totalorder %s27, 0
        // Predicated region
        $region61: #{tpu_custom_call.1} parent=43 // pred_check
          %p363 = pneg %p362
        $region62: #{tpu_custom_call.1} parent=43 // pred_check_branch
          %365 = sbr.rel (%p363) target = $region64
        $region63: #{tpu_custom_call.1} parent=43 // pred_region
          %v366 = vld [vmem:[#allocation5] sm:$0xff]
          %v367 = vld [vmem:[#allocation5 + $0x8] sm:$0xff]
          %v368 = vld [vmem:[#allocation10] sm:$0xff]
          %v369 = vld [vmem:[#allocation10 + $0x8] sm:$0xff]
          %v370 = vld [vmem:[#allocation10 + $0x10] sm:$0xff]
          %v371 = vld [vmem:[#allocation10 + $0x18] sm:$0xff]
          %v372 = vld [vmem:[#allocation10 + $0x20] sm:$0xff]
          %v373 = vld [vmem:[#allocation10 + $0x28] sm:$0xff]
          %v374 = vld [vmem:[#allocation10 + $0x30] sm:$0xff]
          %v375 = vld [vmem:[#allocation10 + $0x38] sm:$0xff]
          %v376 = vld [vmem:[#allocation10 + $0x40] sm:$0xff]
          %v377 = vld [vmem:[#allocation10 + $0x48] sm:$0xff]
          %v378 = vld [vmem:[#allocation10 + $0x50] sm:$0xff]
          %v379 = vld [vmem:[#allocation10 + $0x58] sm:$0xff]
          %v380 = vld [vmem:[#allocation10 + $0x60] sm:$0xff]
          %v381 = vld [vmem:[#allocation10 + $0x68] sm:$0xff]
          %v382 = vld [vmem:[#allocation10 + $0x70] sm:$0xff]
          %v383 = vld [vmem:[#allocation10 + $0x78] sm:$0xff]
          %v384 = vld [vmem:[#allocation10 + $0x80] sm:$0xff]
          %v385 = vld [vmem:[#allocation10 + $0x88] sm:$0xff]
          %v386 = vld [vmem:[#allocation10 + $0x90] sm:$0xff]
          %v387 = vld [vmem:[#allocation10 + $0x98] sm:$0xff]
          %v388 = vld [vmem:[#allocation10 + $0xa0] sm:$0xff]
          %v389 = vld [vmem:[#allocation10 + $0xa8] sm:$0xff]
          %v390 = vld [vmem:[#allocation10 + $0xb0] sm:$0xff]
          %v391 = vld [vmem:[#allocation10 + $0xb8] sm:$0xff]
          %v392 = vld [vmem:[#allocation10 + $0xc0] sm:$0xff]
          %v393 = vld [vmem:[#allocation10 + $0xc8] sm:$0xff]
          %v394 = vld [vmem:[#allocation10 + $0xd0] sm:$0xff]
          %v395 = vld [vmem:[#allocation10 + $0xd8] sm:$0xff]
          %v396 = vld [vmem:[#allocation10 + $0xe0] sm:$0xff]
          %v397 = vld [vmem:[#allocation10 + $0xe8] sm:$0xff]
          %v398 = vld [vmem:[#allocation10 + $0xf0] sm:$0xff]
          %v399 = vld [vmem:[#allocation10 + $0xf8] sm:$0xff]
          %v400 = vld [vmem:[#allocation10 + $0x100] sm:$0xff]
          %v401 = vld [vmem:[#allocation10 + $0x108] sm:$0xff]
          %v402 = vld [vmem:[#allocation10 + $0x110] sm:$0xff]
          %v403 = vld [vmem:[#allocation10 + $0x118] sm:$0xff]
          %v404 = vld [vmem:[#allocation10 + $0x120] sm:$0xff]
          %v405 = vld [vmem:[#allocation10 + $0x128] sm:$0xff]
          %v406 = vld [vmem:[#allocation10 + $0x130] sm:$0xff]
          %v407 = vld [vmem:[#allocation10 + $0x138] sm:$0xff]
          %v408 = vld [vmem:[#allocation10 + $0x140] sm:$0xff]
          %v409 = vld [vmem:[#allocation10 + $0x148] sm:$0xff]
          %v410 = vld [vmem:[#allocation10 + $0x150] sm:$0xff]
          %v411 = vld [vmem:[#allocation10 + $0x158] sm:$0xff]
          %v412 = vld [vmem:[#allocation10 + $0x160] sm:$0xff]
          %v413 = vld [vmem:[#allocation10 + $0x168] sm:$0xff]
          %v414 = vld [vmem:[#allocation10 + $0x170] sm:$0xff]
          %v415 = vld [vmem:[#allocation10 + $0x178] sm:$0xff]
          %v416 = vld [vmem:[#allocation10 + $0x180] sm:$0xff]
          %v417 = vld [vmem:[#allocation10 + $0x188] sm:$0xff]
          %v418 = vld [vmem:[#allocation10 + $0x190] sm:$0xff]
          %v419 = vld [vmem:[#allocation10 + $0x198] sm:$0xff]
          %v420 = vld [vmem:[#allocation10 + $0x1a0] sm:$0xff]
          %v421 = vld [vmem:[#allocation10 + $0x1a8] sm:$0xff]
          %v422 = vld [vmem:[#allocation10 + $0x1b0] sm:$0xff]
          %v423 = vld [vmem:[#allocation10 + $0x1b8] sm:$0xff]
          %v424 = vld [vmem:[#allocation10 + $0x1c0] sm:$0xff]
          %v425 = vld [vmem:[#allocation10 + $0x1c8] sm:$0xff]
          %v426 = vld [vmem:[#allocation10 + $0x1d0] sm:$0xff]
          %v427 = vld [vmem:[#allocation10 + $0x1d8] sm:$0xff]
          %v428 = vld [vmem:[#allocation10 + $0x1e0] sm:$0xff]
          %v429 = vld [vmem:[#allocation10 + $0x1e8] sm:$0xff]
          %v430 = vld [vmem:[#allocation10 + $0x1f0] sm:$0xff]
          %v431 = vld [vmem:[#allocation10 + $0x1f8] sm:$0xff]
          %v432 = vld [vmem:[#allocation10 + $0x200] sm:$0xff]
          %v433 = vld [vmem:[#allocation10 + $0x208] sm:$0xff]
          %v434 = vld [vmem:[#allocation10 + $0x210] sm:$0xff]
          %v435 = vld [vmem:[#allocation10 + $0x218] sm:$0xff]
          %v436 = vld [vmem:[#allocation10 + $0x220] sm:$0xff]
          %v437 = vld [vmem:[#allocation10 + $0x228] sm:$0xff]
          %v438 = vld [vmem:[#allocation10 + $0x230] sm:$0xff]
          %v439 = vld [vmem:[#allocation10 + $0x238] sm:$0xff]
          %v440 = vld [vmem:[#allocation10 + $0x240] sm:$0xff]
          %v441 = vld [vmem:[#allocation10 + $0x248] sm:$0xff]
          %v442 = vld [vmem:[#allocation10 + $0x250] sm:$0xff]
          %v443 = vld [vmem:[#allocation10 + $0x258] sm:$0xff]
          %v444 = vld [vmem:[#allocation10 + $0x260] sm:$0xff]
          %v445 = vld [vmem:[#allocation10 + $0x268] sm:$0xff]
          %v446 = vld [vmem:[#allocation10 + $0x270] sm:$0xff]
          %v447 = vld [vmem:[#allocation10 + $0x278] sm:$0xff]
          %v448 = vld [vmem:[%s3] sm:$0xf]
          %v450 = vlaneseq
          %v451 = vshrl.u32 %v450, 7
          %v452 = vsub.s32 0, %v451
          %v453 = vrot.slane %v448, %v452
          %v454 = vlaneseq
          %v455 = vshrl.u32 %v454, 7
          %v456 = vsub.s32 1, %v455
          %v457 = vrot.slane %v448, %v456
          %v458 = vlaneseq
          %v459 = vshrl.u32 %v458, 7
          %v460 = vsub.s32 2, %v459
          %v461 = vrot.slane %v448, %v460
          %v462 = vlaneseq
          %v463 = vshrl.u32 %v462, 7
          %v464 = vsub.s32 3, %v463
          %v465 = vrot.slane %v448, %v464
          %vm470 = vcmask 261120
          %v472 = vsel %vm470, %v367, 0
          %474 = vmatprep.subr.mxu0 %v429
          %475 = vmatpush1.msra.mxu0 %v428
          %476 = vmatprep.subr.mxu0 %v425
          %477 = vmatpush1.msra.mxu0 %v424
          %478 = vmatprep.subr.mxu0 %v421
          %479 = vmatpush1.msra.mxu0 %v420
          %480 = vmatprep.subr.mxu0 %v417
          %481 = vmatpush1.msra.mxu0 %v416
          %482 = vmatprep.subr.mxu0 %v413
          %483 = vmatpush1.msra.mxu0 %v412
          %484 = vmatprep.subr.mxu0 %v409
          %485 = vmatpush1.msra.mxu0 %v408
          %486 = vmatprep.subr.mxu0 %v405
          %487 = vmatpush1.msra.mxu0 %v404
          %488 = vmatprep.subr.mxu0 %v401
          %489 = vmatpush1.msra.mxu0 %v400
          %490 = vmatprep.subr.mxu0 %v397
          %491 = vmatpush1.msra.mxu0 %v396
          %492 = vmatprep.subr.mxu0 %v393
          %493 = vmatpush1.msra.mxu0 %v392
          %494 = vmatprep.subr.mxu0 %v389
          %495 = vmatpush1.msra.mxu0 %v388
          %496 = vmatprep.subr.mxu0 %v385
          %497 = vmatpush1.msra.mxu0 %v384
          %498 = vmatprep.subr.mxu0 %v381
          %499 = vmatpush1.msra.mxu0 %v380
          %500 = vmatprep.subr.mxu0 %v377
          %501 = vmatpush1.msra.mxu0 %v376
          %502 = vmatprep.subr.mxu0 %v373
          %503 = vmatpush1.msra.mxu0 %v372
          %504 = vmatprep.subr.mxu0 %v369
          %505 = vmatpush1.msra.mxu0 %v368
          %506 = vmatprep.subr.mxu0 0.0
          %507 = vmatpush2.msra.mxu0 0.0
          %508 = vmatprep.subr.mxu0 0.0
          %509 = vmatpush2.msra.mxu0 0.0
          %510 = vmatprep.subr.mxu0 0.0
          %511 = vmatpush2.msra.mxu0 0.0
          %512 = vmatprep.subr.mxu0 0.0
          %513 = vmatpush2.msra.mxu0 0.0
          %514 = vmatprep.subr.mxu0 0.0
          %515 = vmatpush2.msra.mxu0 0.0
          %516 = vmatprep.subr.mxu0 0.0
          %517 = vmatpush2.msra.mxu0 0.0
          %518 = vmatprep.subr.mxu0 0.0
          %519 = vmatpush2.msra.mxu0 0.0
          %520 = vmatprep.subr.mxu0 0.0
          %521 = vmatpush2.msra.mxu0 0.0
          %522 = vmatprep.subr.mxu0 0.0
          %523 = vmatpush2.msra.mxu0 0.0
          %524 = vmatprep.subr.mxu0 0.0
          %525 = vmatpush2.msra.mxu0 0.0
          %526 = vmatprep.subr.mxu0 0.0
          %527 = vmatpush2.msra.mxu0 0.0
          %528 = vmatprep.subr.mxu0 0.0
          %529 = vmatpush2.msra.mxu0 0.0
          %530 = vmatprep.subr.mxu0 %v445
          %531 = vmatpush2.msra.mxu0 %v444
          %532 = vmatprep.subr.mxu0 %v441
          %533 = vmatpush2.msra.mxu0 %v440
          %534 = vmatprep.subr.mxu0 %v437
          %535 = vmatpush2.msra.mxu0 %v436
          %536 = vmatprep.subr.mxu0 %v433
          %537 = vmatpush2.msra.mxu0 %v432
          %538 = vmatprep.mubr.f32.mxu0 %v472
          %539 = vmatmul.mubr.f32.gmra.mxu0 %v366
          %v540 = vpop.f32.mrf.mxu0
          %v541 = vadd.f32 %v453, %v540
          %v542 = vpop.f32.mrf.mxu0
          %v543 = vadd.f32 %v457, %v542
          %544 = vdwg.mxu0
          %545 = vmatprep.subr.mxu0 %v431
          %546 = vmatpush1.msra.mxu0 %v430
          %547 = vmatprep.subr.mxu0 %v427
          %548 = vmatpush1.msra.mxu0 %v426
          %549 = vmatprep.subr.mxu0 %v423
          %550 = vmatpush1.msra.mxu0 %v422
          %551 = vmatprep.subr.mxu0 %v419
          %552 = vmatpush1.msra.mxu0 %v418
          %553 = vmatprep.subr.mxu0 %v415
          %554 = vmatpush1.msra.mxu0 %v414
          %555 = vmatprep.subr.mxu0 %v411
          %556 = vmatpush1.msra.mxu0 %v410
          %557 = vmatprep.subr.mxu0 %v407
          %558 = vmatpush1.msra.mxu0 %v406
          %559 = vmatprep.subr.mxu0 %v403
          %560 = vmatpush1.msra.mxu0 %v402
          %561 = vmatprep.subr.mxu0 %v399
          %562 = vmatpush1.msra.mxu0 %v398
          %563 = vmatprep.subr.mxu0 %v395
          %564 = vmatpush1.msra.mxu0 %v394
          %565 = vmatprep.subr.mxu0 %v391
          %566 = vmatpush1.msra.mxu0 %v390
          %567 = vmatprep.subr.mxu0 %v387
          %568 = vmatpush1.msra.mxu0 %v386
          %569 = vmatprep.subr.mxu0 %v383
          %570 = vmatpush1.msra.mxu0 %v382
          %571 = vmatprep.subr.mxu0 %v379
          %572 = vmatpush1.msra.mxu0 %v378
          %573 = vmatprep.subr.mxu0 %v375
          %574 = vmatpush1.msra.mxu0 %v374
          %575 = vmatprep.subr.mxu0 %v371
          %576 = vmatpush1.msra.mxu0 %v370
          %577 = vmatprep.subr.mxu0 0.0
          %578 = vmatpush2.msra.mxu0 0.0
          %579 = vmatprep.subr.mxu0 0.0
          %580 = vmatpush2.msra.mxu0 0.0
          %581 = vmatprep.subr.mxu0 0.0
          %582 = vmatpush2.msra.mxu0 0.0
          %583 = vmatprep.subr.mxu0 0.0
          %584 = vmatpush2.msra.mxu0 0.0
          %585 = vmatprep.subr.mxu0 0.0
          %586 = vmatpush2.msra.mxu0 0.0
          %587 = vmatprep.subr.mxu0 0.0
          %588 = vmatpush2.msra.mxu0 0.0
          %589 = vmatprep.subr.mxu0 0.0
          %590 = vmatpush2.msra.mxu0 0.0
          %591 = vmatprep.subr.mxu0 0.0
          %592 = vmatpush2.msra.mxu0 0.0
          %593 = vmatprep.subr.mxu0 0.0
          %594 = vmatpush2.msra.mxu0 0.0
          %595 = vmatprep.subr.mxu0 0.0
          %596 = vmatpush2.msra.mxu0 0.0
          %597 = vmatprep.subr.mxu0 0.0
          %598 = vmatpush2.msra.mxu0 0.0
          %599 = vmatprep.subr.mxu0 0.0
          %600 = vmatpush2.msra.mxu0 0.0
          %601 = vmatprep.subr.mxu0 %v447
          %602 = vmatpush2.msra.mxu0 %v446
          %603 = vmatprep.subr.mxu0 %v443
          %604 = vmatpush2.msra.mxu0 %v442
          %605 = vmatprep.subr.mxu0 %v439
          %606 = vmatpush2.msra.mxu0 %v438
          %607 = vmatprep.subr.mxu0 %v435
          %608 = vmatpush2.msra.mxu0 %v434
          %609 = vmatprep.mubr.f32.mxu0 %v472
          %610 = vmatmul.mubr.f32.gmra.mxu0 %v366
          %v611 = vpop.f32.mrf.mxu0
          %v612 = vadd.f32 %v461, %v611
          %v613 = vpop.f32.mrf.mxu0
          %v614 = vadd.f32 %v465, %v613
          %615 = vdwg.mxu0
          %v616 = vxor.u32 %v541, 2147483648
          %v617 = vmul.f32 %v616, 1.442695
          %v618 = vpow.pop %v617
          %v619 = vadd.f32 %v618, 1.0
          %v620 = vrcp.pop %v619
          %v621 = vmul.f32 1.0, %v620
          %v622 = vxor.u32 %v543, 2147483648
          %v623 = vmul.f32 %v622, 1.442695
          %v624 = vpow.pop %v623
          %v625 = vadd.f32 %v624, 1.0
          %v626 = vrcp.pop %v625
          %v627 = vmul.f32 1.0, %v626
          %v628 = vtanh.pop %v612
          %v629 = vxor.u32 %v614, 2147483648
          %v630 = vmul.f32 %v629, 1.442695
          %v631 = vpow.pop %v630
          %v632 = vadd.f32 %v631, 1.0
          %v633 = vrcp.pop %v632
          %v634 = vmul.f32 1.0, %v633
          %v635 = vld [vmem:[#allocation8] sm:$0xff]
          %v636 = vmul.f32 %v627, %v635
          %v637 = vmul.f32 %v621, %v628
          %v638 = vadd.f32 %v636, %v637
          %v639 = vtanh.pop %v638
          %v640 = vmul.f32 %v634, %v639
          %641 = vst [vmem:[#allocation13] sm:$0xff] %v640
          %642 = vst [vmem:[#allocation14] sm:$0xff] %v638
          %v643 = vpack.c.bf16 %v640, %v640
          %644 = vst [vmem:[#allocation2] sm:$0xf] %v643
          %vm645 = vcmask 7168
          %646 = vst.msk [vmem:[#allocation3] sm:$0xff] %vm645, -inf
          %647 = vst.msk [vmem:[#allocation4] sm:$0xff] %vm645, 0
        $region64: #{tpu_custom_call.1} parent=43 // pred_fallthru
          _
        %v648 = vld [vmem:[#allocation2] sm:$0xf]
        %v649 = vld [vmem:[%s327] sm:$0xf]
        %v650 = vld [vmem:[%s327 + $0x4] sm:$0xf]
        %v651 = vld [vmem:[%s327 + $0x8] sm:$0xf]
        %v652 = vld [vmem:[%s327 + $0xc] sm:$0xf]
        %v653 = vld [vmem:[%s327 + $0x10] sm:$0xf]
        %v654 = vld [vmem:[%s327 + $0x14] sm:$0xf]
        %v655 = vld [vmem:[%s327 + $0x18] sm:$0xf]
        %v656 = vld [vmem:[%s327 + $0x1c] sm:$0xf]
        %v657 = vld [vmem:[%s327 + $0x20] sm:$0xf]
        %v658 = vld [vmem:[%s327 + $0x24] sm:$0xf]
        %v659 = vld [vmem:[%s327 + $0x28] sm:$0xf]
        %v660 = vld [vmem:[%s327 + $0x2c] sm:$0xf]
        %v661 = vld [vmem:[%s327 + $0x30] sm:$0xf]
        %v662 = vld [vmem:[%s327 + $0x34] sm:$0xf]
        %v663 = vld [vmem:[%s327 + $0x38] sm:$0xf]
        %v664 = vld [vmem:[%s327 + $0x3c] sm:$0xf]
        %v665 = vld [vmem:[%s360] sm:$0x1]
        %v667 = vlaneseq
        %v668 = vshrl.u32 %v667, 7
        %v669 = vsub.s32 0, %v668
        %v670 = vrot.slane %v665, %v669
        %v688 = vunpack.c.l.b16 %v649
        %v689 = vunpack.c.l.b16 %v650
        %v690 = vunpack.c.l.b16 %v651
        %v691 = vunpack.c.l.b16 %v652
        %v692 = vunpack.c.l.b16 %v653
        %v693 = vunpack.c.l.b16 %v654
        %v694 = vunpack.c.l.b16 %v655
        %v695 = vunpack.c.l.b16 %v656
        %v696 = vunpack.c.l.b16 %v657
        %v697 = vunpack.c.l.b16 %v658
        %v698 = vunpack.c.l.b16 %v659
        %v699 = vunpack.c.l.b16 %v660
        %v700 = vunpack.c.l.b16 %v661
        %v701 = vunpack.c.l.b16 %v662
        %v702 = vunpack.c.l.b16 %v663
        %v703 = vunpack.c.l.b16 %v664
        %v704 = vpack.c.b16 %v689, %v688
        %v705 = vpack.c.b16 %v691, %v690
        %v706 = vpack.c.b16 %v693, %v692
        %v707 = vpack.c.b16 %v695, %v694
        %v708 = vpack.c.b16 %v697, %v696
        %v709 = vpack.c.b16 %v699, %v698
        %v710 = vpack.c.b16 %v701, %v700
        %v711 = vpack.c.b16 %v703, %v702
        %720 = vmatprep.subr.bf16.mxu0 0
        %721 = vmatpush1.bf16.msra.mxu0 %v711
        %722 = vmatprep.subr.bf16.mxu0 0
        %723 = vmatpush1.bf16.msra.mxu0 %v710
        %724 = vmatprep.subr.bf16.mxu0 0
        %725 = vmatpush1.bf16.msra.mxu0 %v709
        %726 = vmatprep.subr.bf16.mxu0 0
        %727 = vmatpush1.bf16.msra.mxu0 %v708
        %728 = vmatprep.subr.bf16.mxu0 0
        %729 = vmatpush1.bf16.msra.mxu0 %v707
        %730 = vmatprep.subr.bf16.mxu0 0
        %731 = vmatpush1.bf16.msra.mxu0 %v706
        %732 = vmatprep.subr.bf16.mxu0 0
        %733 = vmatpush1.bf16.msra.mxu0 %v705
        %734 = vmatprep.subr.bf16.mxu0 0
        %735 = vmatpush1.bf16.msra.mxu0 %v704
        %736 = vmatprep.subr.bf16.mxu0 0
        %737 = vmatpush2.bf16.msra.mxu0 0
        %738 = vmatprep.subr.bf16.mxu0 0
        %739 = vmatpush2.bf16.msra.mxu0 0
        %740 = vmatprep.subr.bf16.mxu0 0
        %741 = vmatpush2.bf16.msra.mxu0 0
        %742 = vmatprep.subr.bf16.mxu0 0
        %743 = vmatpush2.bf16.msra.mxu0 0
        %744 = vmatprep.subr.bf16.mxu0 0
        %745 = vmatpush2.bf16.msra.mxu0 0
        %746 = vmatprep.subr.bf16.mxu0 0
        %747 = vmatpush2.bf16.msra.mxu0 0
        %748 = vmatprep.subr.bf16.mxu0 0
        %749 = vmatpush2.bf16.msra.mxu0 0
        %750 = vmatprep.subr.bf16.mxu0 0
        %751 = vmatpush2.bf16.msra.mxu0 0
        %752 = vmatprep.mubr.bf16.mxu0 0
        %753 = vmatmul.mubr.bf16.gmra.mxu0 %v648
        %v754 = vpop.f32.mrf.mxu0
        %v755 = vadd.f32 %v670, %v754
        %v756 = vpop.f32.mrf.mxu0
        %v757 = vpop.f32.mrf.mxu0
        %v758 = vpop.f32.mrf.mxu0
        %759 = vdwg.mxu0
        %760 = vmax.xlane.f32.xlu0 %v755
        %v761 = vpop.xlane.xlu0 %760
        %v762 = vlaneseq
        %v763 = vand.u32 %v762, 127
        %vm764 = vcmp.eq.f32.partialorder %v755, %v761
        %v765 = vsel %vm764, %v763, 128
        %v766 = vand.u32 %v765, 65535
        %v767 = vshra.s32 %v765, 16
        %v768 = vcvt.s32.f32 %v766
        %v769 = vcvt.s32.f32 %v767
        %770 = vmin.xlane.f32.xlu0 %v769
        %v771 = vpop.xlane.xlu0 %770
        %vm772 = vcmp.eq.f32.partialorder %v769, %v771
        %v773 = vsel %vm772, %v768, inf
        %774 = vmin.xlane.f32.xlu0 %v773
        %v775 = vpop.xlane.xlu0 %774
        %v776 = vcvt.f32.s32 %v775
        %v777 = vcvt.f32.s32 %v771
        %v778 = vshll.u32 %v777, 16
        %v779 = vadd.s32 %v778, %v776
        %s780 = smul.u32 %s27, 128
        %v781 = vstv %s780
        %v782 = vadd.s32 %v779, %v781
        %v783 = vld [vmem:[#allocation3] sm:$0xff]
        %vm784 = vcmp.gt.f32.partialorder %v761, %v783
        %v785 = vld [vmem:[#allocation4] sm:$0xff]
        %v786 = vsel %vm784, %v782, %v785
        %vm787 = vcmask 7168
        %788 = vst.msk [vmem:[#allocation4] sm:$0xff] %vm787, %v786
        %v789 = vld [vmem:[#allocation3] sm:$0xff]
        %v790 = vsel %vm784, %v761, %v789
        %791 = vst.msk [vmem:[#allocation3] sm:$0xff] %vm787, %v790
        %p792 = scmp.eq.s32.totalorder %s27, 3
        // Predicated region
        $region65: #{tpu_custom_call.1} parent=43 // pred_check
          %p793 = pneg %p792
        $region66: #{tpu_custom_call.1} parent=43 // pred_check_branch
          %795 = sbr.rel (%p793) target = $region68
        $region67: #{tpu_custom_call.1} parent=43 // pred_region
          %v796 = vld [vmem:[#allocation4] sm:$0xff]
          %797 = vst.msk [vmem:[%s6] sm:$0xff] %vm787, %v796
        $region68: #{tpu_custom_call.1} parent=43 // pred_fallthru
          _
        // Predicated region
        $region69: #{tpu_custom_call.1} parent=43 // pred_check
          %p798 = pneg %p176
        $region70: #{tpu_custom_call.1} parent=43 // pred_check_branch
          %800 = sbr.rel (%p798) target = $region72
        $region71: #{tpu_custom_call.1} parent=43 // pred_region
          _
        $region72: #{tpu_custom_call.1} parent=43 // pred_fallthru
          _
        // Predicated region
        $region73: #{tpu_custom_call.1} parent=43 // pred_check
          %p801 = pneg %p197
        $region74: #{tpu_custom_call.1} parent=43 // pred_check_branch
          %803 = sbr.rel (%p801) target = $region76
        $region75: #{tpu_custom_call.1} parent=43 // pred_region
          %s805 = ssub.s32 128, 128
          %806 = vsyncadd [#allocation7], %s805
          %s808 = sshll.u32 [#allocation13], 4
          %s809 = int_to_ptr.vmem [resolvable:$true] %s808
          %811 = dma.vmem_to_hbm [thread:$0]  %s809, 128, %s7, [#allocation7]
        $region76: #{tpu_custom_call.1} parent=43 // pred_fallthru
          _
        // Predicated region
        $region77: #{tpu_custom_call.1} parent=43 // pred_check
          %p812 = pneg %p218
        $region78: #{tpu_custom_call.1} parent=43 // pred_check_branch
          %814 = sbr.rel (%p812) target = $region80
        $region79: #{tpu_custom_call.1} parent=43 // pred_region
          %s816 = ssub.s32 128, 128
          %817 = vsyncadd [#allocation15], %s816
          %s819 = sshll.u32 [#allocation14], 4
          %s820 = int_to_ptr.vmem [resolvable:$true] %s819
          %822 = dma.vmem_to_hbm [thread:$0]  %s820, 128, %s8, [#allocation15]
        $region80: #{tpu_custom_call.1} parent=43 // pred_fallthru
          _
        // Predicated region
        $region81: #{tpu_custom_call.1} parent=43 // pred_check
          %p823 = pneg %p176
        $region82: #{tpu_custom_call.1} parent=43 // pred_check_branch
          %825 = sbr.rel (%p823) target = $region84
        $region83: #{tpu_custom_call.1} parent=43 // pred_region
          _
        $region84: #{tpu_custom_call.1} parent=43 // pred_fallthru
          _
        // Predicated region
        $region85: #{tpu_custom_call.1} parent=43 // pred_check
          %p826 = pneg %p197
        $region86: #{tpu_custom_call.1} parent=43 // pred_check_branch
          %828 = sbr.rel (%p826) target = $region88
        $region87: #{tpu_custom_call.1} parent=43 // pred_region
          %829 = dma.done [#allocation7], 128
        $region88: #{tpu_custom_call.1} parent=43 // pred_fallthru
          _
        // Predicated region
        $region89: #{tpu_custom_call.1} parent=43 // pred_check
          %p830 = pneg %p218
        $region90: #{tpu_custom_call.1} parent=43 // pred_check_branch
          %832 = sbr.rel (%p830) target = $region92
        $region91: #{tpu_custom_call.1} parent=43 // pred_region
          %833 = dma.done [#allocation15], 128
        $region92: #{tpu_custom_call.1} parent=43 // pred_fallthru
          _
      $region44: #{tpu_custom_call.1} parent=5 // pred_fallthru
        _
      %p834 = scmp.le.s32.totalorder 2, %s22
      // Predicated region
      $region93: #{tpu_custom_call.1} parent=5 // pred_check
        %p835 = pneg %p834
      $region94: #{tpu_custom_call.1} parent=5 // pred_check_branch
        %837 = sbr.rel (%p835) target = $region96
      $region95: #{tpu_custom_call.1} parent=5 // pred_region
        %s838 = ssub.s32 %s22, 2
      $region96: #{tpu_custom_call.1} parent=5 // pred_fallthru
        _
    $region6: #{tpu_custom_call.1} parent=1 // loop_footer
      %s26 = sadd.s32 1, %s22
    $region7: #{tpu_custom_call.1} parent=1 // loop_footer_branch
      %21 = sbr.rel target = $region3
    $region8: #{tpu_custom_call.1} parent=1 // loop_exit
      _
    %839 = vsyncpa [#allocation6], 1
    %s840 = scalar_lea.sflag [#allocation6], 1
    %841 = vsyncpa %s840, 1
    %842 = vsyncpa [#allocation9], 1
    %843 = vsyncpa [#allocation12], 1
    %s844 = scalar_lea.sflag [#allocation12], 1
    %845 = vsyncpa %s844, 1
    %846 = vsyncpa [#allocation7], 1
    %s847 = scalar_lea.sflag [#allocation7], 1
    %848 = vsyncpa %s847, 1
    %849 = vsyncpa [#allocation15], 1

</llo_original>
